<compile_context>
chip_gen: v5e
topology: v5e:2x2
jax: 0.10.0
libtpu: 0.0.40
codegen_flags: <defaults>
</compile_context>

<pallas_src>
import functools

import jax
import jax.numpy as jnp
from jax import lax
from jax.experimental import pallas as pl
from jax.experimental.pallas import tpu as pltpu


def _lstm_forward_kernel(x_ref, wih_ref, whh_ref, b_ref, wlin_ref, blin_ref,
                         out_ref, *, hidden_size, seq_len, block_batch):
    """Forward pass for one batch-block of independent sequences.

    x_ref:    (1, T*BB, IN_PAD)  inputs, row t*BB + b holds sequence b, step t
    wih_ref:  (IN_PAD, 4H)       W_ih^T, i/f/o columns pre-scaled by 0.5
    whh_ref:  (H, 4H)            W_hh^T, i/f/o columns pre-scaled by 0.5
    b_ref:    (1, 4H)            b_ih + b_hh, i/f/o entries pre-scaled by 0.5
    wlin_ref: (H, OPAD)          final Linear weight^T, zero-padded to 128 lanes
    blin_ref: (1, OPAD)          final Linear bias, zero-padded to 128 lanes
    out_ref:  (1, T*BB, OPAD)    padded output (sliced to output_size in wrapper)
    """
    H = hidden_size
    T = seq_len
    B = block_batch

    x = x_ref[0]                                            # (T*B, IN_PAD)

    # Hoisted input projection + (pre-scaled) bias: one batched MXU matmul for
    # all timesteps and all sequences in the block, off the serial chain.
    xg = (
        jnp.dot(x, wih_ref[...], preferred_element_type=jnp.float32)
        + b_ref[...]
    )                                                       # (T*B, 4H)

    # Recurrent weight read hoisted once; stays resident across all steps.
    whh_t = whh_ref[...]                                    # (H, 4H)

    # Constant per-lane affine that turns one tanh of the (pre-scaled) gates
    # into [sigmoid(i), sigmoid(f), tanh(g), sigmoid(o)].
    lane = lax.broadcasted_iota(jnp.int32, (1, 4 * H), 1)
    is_g = (lane >= 2 * H) & (lane < 3 * H)
    g_scale = jnp.where(is_g, 1.0, 0.5).astype(jnp.float32)  # (1, 4H)
    g_shift = jnp.where(is_g, 0.0, 0.5).astype(jnp.float32)  # (1, 4H)

    # Per-step rows of xg hoisted out of the recurrence (sublane-block slices).
    xg_rows = [xg[t * B:(t + 1) * B, :] for t in range(T)]

    h = jnp.zeros((B, H), jnp.float32)
    c = jnp.zeros((B, H), jnp.float32)
    hs = []
    # T is small and static: fully unroll so only the true serial dependency
    # (one (B,H)x(H,4H) matmul + gate math per step) remains.
    for t in range(T):
        gates = xg_rows[t] + jnp.dot(
            h, whh_t, preferred_element_type=jnp.float32)   # (B, 4H) order i,f,g,o
        # Single full-width EUP tanh per step; constant affine recovers sigmoid
        # on the i/f/o quarters (exact up to f32 rounding).
        act = jnp.tanh(gates) * g_scale + g_shift           # (B, 4H)
        i_g = act[:, 0 * H:1 * H]
        f_g = act[:, 1 * H:2 * H]
        g_g = act[:, 2 * H:3 * H]
        o_g = act[:, 3 * H:4 * H]
        c = f_g * c + i_g * g_g
        h = o_g * jnp.tanh(c)
        hs.append(h)

    # Single materialization of the hidden-state history, row order t*B + b
    # (matches the input row order, so the output unpacks host-side).
    h_all = jnp.concatenate(hs, axis=0)                     # (T*B, H)

    # nn.Dropout(0.5) is identity in eval/inference mode.
    h_relu = jnp.maximum(h_all, 0.0)

    # Lane-dense final store: one full unmasked (T*B, 128) tile.
    out_ref[0] = (
        jnp.dot(h_relu, wlin_ref[...], preferred_element_type=jnp.float32)
        + blin_ref[...]
    )


def lstm_forward_batched(data_batch, params, *, hidden_size, output_size,
                         block_batch=8):
    """Run the module forward on a batch of independent sequences.

    data_batch: (NB, T, ...) — each sequence is processed exactly like the
    PyTorch module's forward (which sees batch=1).  Returns (NB, T, output_size).
    """
    assert block_batch % 8 == 0
    NB, T = data_batch.shape[0], data_batch.shape[1]
    x = data_batch.astype(jnp.float32).reshape(NB, T, -1)   # (NB, T, 15)
    in_features = x.shape[-1]
    H = hidden_size
    BB = block_batch

    # --- host-side weight prep -------------------------------------------------
    w_ih, w_hh, b_ih, b_hh, w_lin, b_lin = (
        params["w_ih"], params["w_hh"], params["b_ih"],
        params["b_hh"], params["w_lin"], params["b_lin"],
    )
    # Pre-scale the i/f/o gate columns by 0.5 so a single in-kernel tanh plus a
    # constant affine reproduces sigmoid: sigmoid(x) = 0.5*(1 + tanh(x/2)).
    scale = jnp.concatenate([
        jnp.full((H,), 0.5, jnp.float32),   # i
        jnp.full((H,), 0.5, jnp.float32),   # f
        jnp.ones((H,), jnp.float32),        # g
        jnp.full((H,), 0.5, jnp.float32),   # o
    ])
    wih_t = w_ih.T.astype(jnp.float32) * scale[None, :]      # (IN, 4H)
    whh_t = w_hh.T.astype(jnp.float32) * scale[None, :]      # (H, 4H)
    b = ((b_ih + b_hh).astype(jnp.float32) * scale).reshape(1, 4 * H)

    # Pad the LSTM input feature dim 15 -> 16 (aligned contraction).
    in_pad = ((in_features + 7) // 8) * 8
    wih_t_pad = (
        jnp.zeros((in_pad, 4 * H), jnp.float32).at[:in_features, :].set(wih_t)
    )

    # Pad the final Linear to 128 output lanes (unmasked lane-dense store).
    out_pad = ((output_size + 127) // 128) * 128
    wlin_t_pad = (
        jnp.zeros((H, out_pad), jnp.float32)
        .at[:, :output_size].set(w_lin.T.astype(jnp.float32))
    )
    blin_pad = (
        jnp.zeros((1, out_pad), jnp.float32)
        .at[:, :output_size].set(b_lin.astype(jnp.float32))
    )

    # --- host-side input arrangement: (NBLK, T*BB, IN_PAD) ---------------------
    nblk = -(-NB // BB)
    nb_pad = nblk * BB
    xf = (
        jnp.zeros((nb_pad, T, in_pad), jnp.float32)
        .at[:NB, :, :in_features].set(x)
    )
    x2 = (
        xf.reshape(nblk, BB, T, in_pad)
        .transpose(0, 2, 1, 3)
        .reshape(nblk, T * BB, in_pad)
    )

    kernel = functools.partial(
        _lstm_forward_kernel, hidden_size=H, seq_len=T, block_batch=BB
    )
    out2 = pl.pallas_call(
        kernel,
        out_shape=jax.ShapeDtypeStruct((nblk, T * BB, out_pad), jnp.float32),
        grid=(nblk,),
        in_specs=[
            pl.BlockSpec((1, T * BB, in_pad), lambda i: (i, 0, 0)),
            pl.BlockSpec((in_pad, 4 * H), lambda i: (0, 0)),
            pl.BlockSpec((H, 4 * H), lambda i: (0, 0)),
            pl.BlockSpec((1, 4 * H), lambda i: (0, 0)),
            pl.BlockSpec((H, out_pad), lambda i: (0, 0)),
            pl.BlockSpec((1, out_pad), lambda i: (0, 0)),
        ],
        out_specs=pl.BlockSpec((1, T * BB, out_pad), lambda i: (i, 0, 0)),
        compiler_params=pltpu.CompilerParams(
            dimension_semantics=("parallel",)),   # v7x: batch blocks split across TCs
    )(x2, wih_t_pad, whh_t, b, wlin_t_pad, blin_pad)

    out = (
        out2.reshape(nblk, T, BB, out_pad)
        .transpose(0, 2, 1, 3)
        .reshape(nb_pad, T, out_pad)
    )
    return out[:NB, :, :output_size]


def lstm_forward(data, params, *, hidden_size, output_size):
    """Single-sequence forward, exactly the PyTorch module's semantics."""
    return lstm_forward_batched(
        data[None, ...], params, hidden_size=hidden_size, output_size=output_size
    )[0]


def lstm_forward_ref(data, params, *, hidden_size, output_size):
    """Pure-JAX reference (mirrors torch.nn.LSTM eval-mode forward)."""
    T = data.shape[0]
    x = data.astype(jnp.float32).reshape(T, -1)
    H = hidden_size
    w_ih, w_hh = params["w_ih"], params["w_hh"]
    b = params["b_ih"] + params["b_hh"]

    def step(carry, x_t):
        h, c = carry
        gates = x_t @ w_ih.T + h @ w_hh.T + b
        i_g = jax.nn.sigmoid(gates[0 * H:1 * H])
        f_g = jax.nn.sigmoid(gates[1 * H:2 * H])
        g_g = jnp.tanh(gates[2 * H:3 * H])
        o_g = jax.nn.sigmoid(gates[3 * H:4 * H])
        c_new = f_g * c + i_g * g_g
        h_new = o_g * jnp.tanh(c_new)
        return (h_new, c_new), h_new

    h0 = jnp.zeros((H,), jnp.float32)
    c0 = jnp.zeros((H,), jnp.float32)
    _, h_all = lax.scan(step, (h0, c0), x)                  # (T, H)
    h_relu = jnp.maximum(h_all, 0.0)
    return h_relu @ params["w_lin"].T + params["b_lin"]


def init_params(key, *, lstm_input_size, hidden_size, output_size):
    """Deterministic PyTorch-style uniform(-1/sqrt(H), 1/sqrt(H)) init."""
    ks = jax.random.split(key, 6)
    bound = 1.0 / jnp.sqrt(jnp.float32(hidden_size))

    def u(k, shape):
        return jax.random.uniform(k, shape, jnp.float32, -bound, bound)

    return {
        "w_ih": u(ks[0], (4 * hidden_size, lstm_input_size)),
        "w_hh": u(ks[1], (4 * hidden_size, hidden_size)),
        "b_ih": u(ks[2], (4 * hidden_size,)),
        "b_hh": u(ks[3], (4 * hidden_size,)),
        "w_lin": u(ks[4], (output_size, hidden_size)),
        "b_lin": u(ks[5], (output_size,)),
    }


if __name__ == "__main__":
    # Module config: nn.LSTM input_size is hard-coded to 15 in the PyTorch code,
    # so each input row must flatten to 15 features.
    SEQ_LEN = 8          # data.shape[0] -> sequence length after view(1, T, -1)
    LSTM_IN = 15
    HIDDEN = 32
    OUT = 4
    BATCH = 8            # independent sequences fused into one pallas_call

    key = jax.random.PRNGKey(0)
    k_data, k_params = jax.random.split(key)
    data_batch = jax.random.normal(k_data, (BATCH, SEQ_LEN, LSTM_IN), jnp.float32)
    params = init_params(
        k_params, lstm_input_size=LSTM_IN, hidden_size=HIDDEN, output_size=OUT
    )

    # Batched path (many independent sequences, one kernel launch).
    out = lstm_forward_batched(
        data_batch, params, hidden_size=HIDDEN, output_size=OUT
    )
    out = jax.block_until_ready(out)

    # Single-sequence path (exact module interface).
    out_single = lstm_forward(
        data_batch[0], params, hidden_size=HIDDEN, output_size=OUT
    )
    out_single = jax.block_until_ready(out_single)

    ref_all = jax.vmap(
        lambda d: lstm_forward_ref(d, params, hidden_size=HIDDEN, output_size=OUT)
    )(data_batch)

    assert out.shape == (BATCH, SEQ_LEN, OUT) and out.dtype == jnp.float32
    assert out_single.shape == (SEQ_LEN, OUT)
    assert jnp.allclose(out, ref_all, rtol=1e-3, atol=1e-3), "batched mismatch"
    assert jnp.allclose(out_single, ref_all[0], rtol=1e-3, atol=1e-3), "single mismatch"

    # TODO(synk): nn.BatchNorm1d(bn1) is instantiated but never used in forward;
    # nn.Dropout(0.5) is treated as identity (inference mode).
    print("KERNEL_OK")
</pallas_src>

<mosaic_0001>
module attributes {stable_mosaic.version = 11 : i64} {
  func.func @_lstm_forward_kernel(%arg0: i32, %arg1: memref<1x64x16xf32, #tpu.memory_space<vmem>>, %arg2: memref<16x128xf32, #tpu.memory_space<vmem>>, %arg3: memref<32x128xf32, #tpu.memory_space<vmem>>, %arg4: memref<1x128xf32, #tpu.memory_space<vmem>>, %arg5: memref<32x128xf32, #tpu.memory_space<vmem>>, %arg6: memref<1x128xf32, #tpu.memory_space<vmem>>, %arg7: memref<1x64x128xf32, #tpu.memory_space<vmem>>) attributes {dimension_semantics = [#tpu.dimension_semantics<parallel>], iteration_bounds = array<i64: 1>, scalar_prefetch = 0 : i64, scratch_operands = 0 : i64, tpu.core_type = #tpu.core_type<tc>, window_params = [{transform_indices = @transform_0, window_bounds = array<i64: 1, 64, 16>}, {pipeline_mode = #tpu.pipeline_mode<synchronous>, transform_indices = @transform_1, window_bounds = array<i64: 16, 128>}, {pipeline_mode = #tpu.pipeline_mode<synchronous>, transform_indices = @transform_2, window_bounds = array<i64: 32, 128>}, {pipeline_mode = #tpu.pipeline_mode<synchronous>, transform_indices = @transform_3, window_bounds = array<i64: 1, 128>}, {pipeline_mode = #tpu.pipeline_mode<synchronous>, transform_indices = @transform_4, window_bounds = array<i64: 32, 128>}, {pipeline_mode = #tpu.pipeline_mode<synchronous>, transform_indices = @transform_5, window_bounds = array<i64: 1, 128>}, {transform_indices = @transform_6, window_bounds = array<i64: 1, 64, 128>}]} {
    %c0 = arith.constant 0 : index
    %c0_0 = arith.constant 0 : index
    %c0_1 = arith.constant 0 : index
    %0 = vector.load %arg1[%c0, %c0_0, %c0_1] : memref<1x64x16xf32, #tpu.memory_space<vmem>>, vector<1x64x16xf32>
    %1 = vector.shape_cast %0 : vector<1x64x16xf32> to vector<64x16xf32>
    %c0_2 = arith.constant 0 : index
    %c0_3 = arith.constant 0 : index
    %2 = vector.load %arg2[%c0_2, %c0_3] : memref<16x128xf32, #tpu.memory_space<vmem>>, vector<16x128xf32>
    %cst = arith.constant dense<0.000000e+00> : vector<64x128xf32>
    %3 = tpu.matmul %1, %2, %cst {dimension_numbers = #tpu.dot_dimension_numbers<[1], [0], [0], [1], [0, 0, 1, 1], [], []>} : vector<64x16xf32>, vector<16x128xf32>, vector<64x128xf32> -> vector<64x128xf32>
    %c0_4 = arith.constant 0 : index
    %c0_5 = arith.constant 0 : index
    %4 = vector.load %arg4[%c0_4, %c0_5] : memref<1x128xf32, #tpu.memory_space<vmem>>, vector<1x128xf32>
    %5 = vector.broadcast %4 : vector<1x128xf32> to vector<64x128xf32>
    %6 = arith.addf %3, %5 : vector<64x128xf32>
    %c0_6 = arith.constant 0 : index
    %c0_7 = arith.constant 0 : index
    %7 = vector.load %arg3[%c0_6, %c0_7] : memref<32x128xf32, #tpu.memory_space<vmem>>, vector<32x128xf32>
    %8 = tpu.iota {dimensions = array<i32: 1>} : vector<1x128xi32>
    %c64_i32 = arith.constant 64 : i32
    %9 = vector.broadcast %c64_i32 : i32 to vector<1x128xi32>
    %10 = arith.cmpi sge, %8, %9 : vector<1x128xi32>
    %c96_i32 = arith.constant 96 : i32
    %11 = vector.broadcast %c96_i32 : i32 to vector<1x128xi32>
    %12 = arith.cmpi slt, %8, %11 : vector<1x128xi32>
    %13 = arith.andi %10, %12 : vector<1x128xi1>
    %cst_8 = arith.constant 1.000000e+00 : f32
    %cst_9 = arith.constant 5.000000e-01 : f32
    %14 = vector.broadcast %cst_8 : f32 to vector<1x128xf32>
    %15 = vector.broadcast %cst_9 : f32 to vector<1x128xf32>
    %16 = arith.select %13, %14, %15 : vector<1x128xi1>, vector<1x128xf32>
    %cst_10 = arith.constant 0.000000e+00 : f32
    %cst_11 = arith.constant 5.000000e-01 : f32
    %17 = vector.broadcast %cst_10 : f32 to vector<1x128xf32>
    %18 = vector.broadcast %cst_11 : f32 to vector<1x128xf32>
    %19 = arith.select %13, %17, %18 : vector<1x128xi1>, vector<1x128xf32>
    %20 = vector.extract_strided_slice %6 {offsets = [0, 0], sizes = [8, 128], strides = [1, 1]} : vector<64x128xf32> to vector<8x128xf32>
    %21 = vector.extract_strided_slice %6 {offsets = [8, 0], sizes = [8, 128], strides = [1, 1]} : vector<64x128xf32> to vector<8x128xf32>
    %22 = vector.extract_strided_slice %6 {offsets = [16, 0], sizes = [8, 128], strides = [1, 1]} : vector<64x128xf32> to vector<8x128xf32>
    %23 = vector.extract_strided_slice %6 {offsets = [24, 0], sizes = [8, 128], strides = [1, 1]} : vector<64x128xf32> to vector<8x128xf32>
    %24 = vector.extract_strided_slice %6 {offsets = [32, 0], sizes = [8, 128], strides = [1, 1]} : vector<64x128xf32> to vector<8x128xf32>
    %25 = vector.extract_strided_slice %6 {offsets = [40, 0], sizes = [8, 128], strides = [1, 1]} : vector<64x128xf32> to vector<8x128xf32>
    %26 = vector.extract_strided_slice %6 {offsets = [48, 0], sizes = [8, 128], strides = [1, 1]} : vector<64x128xf32> to vector<8x128xf32>
    %27 = vector.extract_strided_slice %6 {offsets = [56, 0], sizes = [8, 128], strides = [1, 1]} : vector<64x128xf32> to vector<8x128xf32>
    %cst_12 = arith.constant 0.000000e+00 : f32
    %28 = vector.broadcast %cst_12 : f32 to vector<8x32xf32>
    %cst_13 = arith.constant 0.000000e+00 : f32
    %29 = vector.broadcast %cst_13 : f32 to vector<8x32xf32>
    %cst_14 = arith.constant dense<0.000000e+00> : vector<8x128xf32>
    %30 = tpu.matmul %28, %7, %cst_14 {dimension_numbers = #tpu.dot_dimension_numbers<[1], [0], [0], [1], [0, 0, 1, 1], [], []>} : vector<8x32xf32>, vector<32x128xf32>, vector<8x128xf32> -> vector<8x128xf32>
    %31 = arith.addf %20, %30 : vector<8x128xf32>
    %32 = math.tanh %31 : vector<8x128xf32>
    %33 = vector.broadcast %16 : vector<1x128xf32> to vector<8x128xf32>
    %34 = arith.mulf %32, %33 : vector<8x128xf32>
    %35 = vector.broadcast %19 : vector<1x128xf32> to vector<8x128xf32>
    %36 = arith.addf %34, %35 : vector<8x128xf32>
    %37 = vector.extract_strided_slice %36 {offsets = [0, 0], sizes = [8, 32], strides = [1, 1]} : vector<8x128xf32> to vector<8x32xf32>
    %38 = vector.extract_strided_slice %36 {offsets = [0, 32], sizes = [8, 32], strides = [1, 1]} : vector<8x128xf32> to vector<8x32xf32>
    %39 = vector.extract_strided_slice %36 {offsets = [0, 64], sizes = [8, 32], strides = [1, 1]} : vector<8x128xf32> to vector<8x32xf32>
    %40 = vector.extract_strided_slice %36 {offsets = [0, 96], sizes = [8, 32], strides = [1, 1]} : vector<8x128xf32> to vector<8x32xf32>
    %41 = arith.mulf %38, %29 : vector<8x32xf32>
    %42 = arith.mulf %37, %39 : vector<8x32xf32>
    %43 = arith.addf %41, %42 : vector<8x32xf32>
    %44 = math.tanh %43 : vector<8x32xf32>
    %45 = arith.mulf %40, %44 : vector<8x32xf32>
    %cst_15 = arith.constant dense<0.000000e+00> : vector<8x128xf32>
    %46 = tpu.matmul %45, %7, %cst_15 {dimension_numbers = #tpu.dot_dimension_numbers<[1], [0], [0], [1], [0, 0, 1, 1], [], []>} : vector<8x32xf32>, vector<32x128xf32>, vector<8x128xf32> -> vector<8x128xf32>
    %47 = arith.addf %21, %46 : vector<8x128xf32>
    %48 = math.tanh %47 : vector<8x128xf32>
    %49 = vector.broadcast %16 : vector<1x128xf32> to vector<8x128xf32>
    %50 = arith.mulf %48, %49 : vector<8x128xf32>
    %51 = vector.broadcast %19 : vector<1x128xf32> to vector<8x128xf32>
    %52 = arith.addf %50, %51 : vector<8x128xf32>
    %53 = vector.extract_strided_slice %52 {offsets = [0, 0], sizes = [8, 32], strides = [1, 1]} : vector<8x128xf32> to vector<8x32xf32>
    %54 = vector.extract_strided_slice %52 {offsets = [0, 32], sizes = [8, 32], strides = [1, 1]} : vector<8x128xf32> to vector<8x32xf32>
    %55 = vector.extract_strided_slice %52 {offsets = [0, 64], sizes = [8, 32], strides = [1, 1]} : vector<8x128xf32> to vector<8x32xf32>
    %56 = vector.extract_strided_slice %52 {offsets = [0, 96], sizes = [8, 32], strides = [1, 1]} : vector<8x128xf32> to vector<8x32xf32>
    %57 = arith.mulf %54, %43 : vector<8x32xf32>
    %58 = arith.mulf %53, %55 : vector<8x32xf32>
    %59 = arith.addf %57, %58 : vector<8x32xf32>
    %60 = math.tanh %59 : vector<8x32xf32>
    %61 = arith.mulf %56, %60 : vector<8x32xf32>
    %cst_16 = arith.constant dense<0.000000e+00> : vector<8x128xf32>
    %62 = tpu.matmul %61, %7, %cst_16 {dimension_numbers = #tpu.dot_dimension_numbers<[1], [0], [0], [1], [0, 0, 1, 1], [], []>} : vector<8x32xf32>, vector<32x128xf32>, vector<8x128xf32> -> vector<8x128xf32>
    %63 = arith.addf %22, %62 : vector<8x128xf32>
    %64 = math.tanh %63 : vector<8x128xf32>
    %65 = vector.broadcast %16 : vector<1x128xf32> to vector<8x128xf32>
    %66 = arith.mulf %64, %65 : vector<8x128xf32>
    %67 = vector.broadcast %19 : vector<1x128xf32> to vector<8x128xf32>
    %68 = arith.addf %66, %67 : vector<8x128xf32>
    %69 = vector.extract_strided_slice %68 {offsets = [0, 0], sizes = [8, 32], strides = [1, 1]} : vector<8x128xf32> to vector<8x32xf32>
    %70 = vector.extract_strided_slice %68 {offsets = [0, 32], sizes = [8, 32], strides = [1, 1]} : vector<8x128xf32> to vector<8x32xf32>
    %71 = vector.extract_strided_slice %68 {offsets = [0, 64], sizes = [8, 32], strides = [1, 1]} : vector<8x128xf32> to vector<8x32xf32>
    %72 = vector.extract_strided_slice %68 {offsets = [0, 96], sizes = [8, 32], strides = [1, 1]} : vector<8x128xf32> to vector<8x32xf32>
    %73 = arith.mulf %70, %59 : vector<8x32xf32>
    %74 = arith.mulf %69, %71 : vector<8x32xf32>
    %75 = arith.addf %73, %74 : vector<8x32xf32>
    %76 = math.tanh %75 : vector<8x32xf32>
    %77 = arith.mulf %72, %76 : vector<8x32xf32>
    %cst_17 = arith.constant dense<0.000000e+00> : vector<8x128xf32>
    %78 = tpu.matmul %77, %7, %cst_17 {dimension_numbers = #tpu.dot_dimension_numbers<[1], [0], [0], [1], [0, 0, 1, 1], [], []>} : vector<8x32xf32>, vector<32x128xf32>, vector<8x128xf32> -> vector<8x128xf32>
    %79 = arith.addf %23, %78 : vector<8x128xf32>
    %80 = math.tanh %79 : vector<8x128xf32>
    %81 = vector.broadcast %16 : vector<1x128xf32> to vector<8x128xf32>
    %82 = arith.mulf %80, %81 : vector<8x128xf32>
    %83 = vector.broadcast %19 : vector<1x128xf32> to vector<8x128xf32>
    %84 = arith.addf %82, %83 : vector<8x128xf32>
    %85 = vector.extract_strided_slice %84 {offsets = [0, 0], sizes = [8, 32], strides = [1, 1]} : vector<8x128xf32> to vector<8x32xf32>
    %86 = vector.extract_strided_slice %84 {offsets = [0, 32], sizes = [8, 32], strides = [1, 1]} : vector<8x128xf32> to vector<8x32xf32>
    %87 = vector.extract_strided_slice %84 {offsets = [0, 64], sizes = [8, 32], strides = [1, 1]} : vector<8x128xf32> to vector<8x32xf32>
    %88 = vector.extract_strided_slice %84 {offsets = [0, 96], sizes = [8, 32], strides = [1, 1]} : vector<8x128xf32> to vector<8x32xf32>
    %89 = arith.mulf %86, %75 : vector<8x32xf32>
    %90 = arith.mulf %85, %87 : vector<8x32xf32>
    %91 = arith.addf %89, %90 : vector<8x32xf32>
    %92 = math.tanh %91 : vector<8x32xf32>
    %93 = arith.mulf %88, %92 : vector<8x32xf32>
    %cst_18 = arith.constant dense<0.000000e+00> : vector<8x128xf32>
    %94 = tpu.matmul %93, %7, %cst_18 {dimension_numbers = #tpu.dot_dimension_numbers<[1], [0], [0], [1], [0, 0, 1, 1], [], []>} : vector<8x32xf32>, vector<32x128xf32>, vector<8x128xf32> -> vector<8x128xf32>
    %95 = arith.addf %24, %94 : vector<8x128xf32>
    %96 = math.tanh %95 : vector<8x128xf32>
    %97 = vector.broadcast %16 : vector<1x128xf32> to vector<8x128xf32>
    %98 = arith.mulf %96, %97 : vector<8x128xf32>
    %99 = vector.broadcast %19 : vector<1x128xf32> to vector<8x128xf32>
    %100 = arith.addf %98, %99 : vector<8x128xf32>
    %101 = vector.extract_strided_slice %100 {offsets = [0, 0], sizes = [8, 32], strides = [1, 1]} : vector<8x128xf32> to vector<8x32xf32>
    %102 = vector.extract_strided_slice %100 {offsets = [0, 32], sizes = [8, 32], strides = [1, 1]} : vector<8x128xf32> to vector<8x32xf32>
    %103 = vector.extract_strided_slice %100 {offsets = [0, 64], sizes = [8, 32], strides = [1, 1]} : vector<8x128xf32> to vector<8x32xf32>
    %104 = vector.extract_strided_slice %100 {offsets = [0, 96], sizes = [8, 32], strides = [1, 1]} : vector<8x128xf32> to vector<8x32xf32>
    %105 = arith.mulf %102, %91 : vector<8x32xf32>
    %106 = arith.mulf %101, %103 : vector<8x32xf32>
    %107 = arith.addf %105, %106 : vector<8x32xf32>
    %108 = math.tanh %107 : vector<8x32xf32>
    %109 = arith.mulf %104, %108 : vector<8x32xf32>
    %cst_19 = arith.constant dense<0.000000e+00> : vector<8x128xf32>
    %110 = tpu.matmul %109, %7, %cst_19 {dimension_numbers = #tpu.dot_dimension_numbers<[1], [0], [0], [1], [0, 0, 1, 1], [], []>} : vector<8x32xf32>, vector<32x128xf32>, vector<8x128xf32> -> vector<8x128xf32>
    %111 = arith.addf %25, %110 : vector<8x128xf32>
    %112 = math.tanh %111 : vector<8x128xf32>
    %113 = vector.broadcast %16 : vector<1x128xf32> to vector<8x128xf32>
    %114 = arith.mulf %112, %113 : vector<8x128xf32>
    %115 = vector.broadcast %19 : vector<1x128xf32> to vector<8x128xf32>
    %116 = arith.addf %114, %115 : vector<8x128xf32>
    %117 = vector.extract_strided_slice %116 {offsets = [0, 0], sizes = [8, 32], strides = [1, 1]} : vector<8x128xf32> to vector<8x32xf32>
    %118 = vector.extract_strided_slice %116 {offsets = [0, 32], sizes = [8, 32], strides = [1, 1]} : vector<8x128xf32> to vector<8x32xf32>
    %119 = vector.extract_strided_slice %116 {offsets = [0, 64], sizes = [8, 32], strides = [1, 1]} : vector<8x128xf32> to vector<8x32xf32>
    %120 = vector.extract_strided_slice %116 {offsets = [0, 96], sizes = [8, 32], strides = [1, 1]} : vector<8x128xf32> to vector<8x32xf32>
    %121 = arith.mulf %118, %107 : vector<8x32xf32>
    %122 = arith.mulf %117, %119 : vector<8x32xf32>
    %123 = arith.addf %121, %122 : vector<8x32xf32>
    %124 = math.tanh %123 : vector<8x32xf32>
    %125 = arith.mulf %120, %124 : vector<8x32xf32>
    %cst_20 = arith.constant dense<0.000000e+00> : vector<8x128xf32>
    %126 = tpu.matmul %125, %7, %cst_20 {dimension_numbers = #tpu.dot_dimension_numbers<[1], [0], [0], [1], [0, 0, 1, 1], [], []>} : vector<8x32xf32>, vector<32x128xf32>, vector<8x128xf32> -> vector<8x128xf32>
    %127 = arith.addf %26, %126 : vector<8x128xf32>
    %128 = math.tanh %127 : vector<8x128xf32>
    %129 = vector.broadcast %16 : vector<1x128xf32> to vector<8x128xf32>
    %130 = arith.mulf %128, %129 : vector<8x128xf32>
    %131 = vector.broadcast %19 : vector<1x128xf32> to vector<8x128xf32>
    %132 = arith.addf %130, %131 : vector<8x128xf32>
    %133 = vector.extract_strided_slice %132 {offsets = [0, 0], sizes = [8, 32], strides = [1, 1]} : vector<8x128xf32> to vector<8x32xf32>
    %134 = vector.extract_strided_slice %132 {offsets = [0, 32], sizes = [8, 32], strides = [1, 1]} : vector<8x128xf32> to vector<8x32xf32>
    %135 = vector.extract_strided_slice %132 {offsets = [0, 64], sizes = [8, 32], strides = [1, 1]} : vector<8x128xf32> to vector<8x32xf32>
    %136 = vector.extract_strided_slice %132 {offsets = [0, 96], sizes = [8, 32], strides = [1, 1]} : vector<8x128xf32> to vector<8x32xf32>
    %137 = arith.mulf %134, %123 : vector<8x32xf32>
    %138 = arith.mulf %133, %135 : vector<8x32xf32>
    %139 = arith.addf %137, %138 : vector<8x32xf32>
    %140 = math.tanh %139 : vector<8x32xf32>
    %141 = arith.mulf %136, %140 : vector<8x32xf32>
    %cst_21 = arith.constant dense<0.000000e+00> : vector<8x128xf32>
    %142 = tpu.matmul %141, %7, %cst_21 {dimension_numbers = #tpu.dot_dimension_numbers<[1], [0], [0], [1], [0, 0, 1, 1], [], []>} : vector<8x32xf32>, vector<32x128xf32>, vector<8x128xf32> -> vector<8x128xf32>
    %143 = arith.addf %27, %142 : vector<8x128xf32>
    %144 = math.tanh %143 : vector<8x128xf32>
    %145 = vector.broadcast %16 : vector<1x128xf32> to vector<8x128xf32>
    %146 = arith.mulf %144, %145 : vector<8x128xf32>
    %147 = vector.broadcast %19 : vector<1x128xf32> to vector<8x128xf32>
    %148 = arith.addf %146, %147 : vector<8x128xf32>
    %149 = vector.extract_strided_slice %148 {offsets = [0, 0], sizes = [8, 32], strides = [1, 1]} : vector<8x128xf32> to vector<8x32xf32>
    %150 = vector.extract_strided_slice %148 {offsets = [0, 32], sizes = [8, 32], strides = [1, 1]} : vector<8x128xf32> to vector<8x32xf32>
    %151 = vector.extract_strided_slice %148 {offsets = [0, 64], sizes = [8, 32], strides = [1, 1]} : vector<8x128xf32> to vector<8x32xf32>
    %152 = vector.extract_strided_slice %148 {offsets = [0, 96], sizes = [8, 32], strides = [1, 1]} : vector<8x128xf32> to vector<8x32xf32>
    %153 = arith.mulf %150, %139 : vector<8x32xf32>
    %154 = arith.mulf %149, %151 : vector<8x32xf32>
    %155 = arith.addf %153, %154 : vector<8x32xf32>
    %156 = math.tanh %155 : vector<8x32xf32>
    %157 = arith.mulf %152, %156 : vector<8x32xf32>
    %158 = tpu.concatenate %45, %61, %77, %93, %109, %125, %141, %157 in 0 : vector<8x32xf32>, vector<8x32xf32>, vector<8x32xf32>, vector<8x32xf32>, vector<8x32xf32>, vector<8x32xf32>, vector<8x32xf32>, vector<8x32xf32> -> vector<64x32xf32>
    %cst_22 = arith.constant 0.000000e+00 : f32
    %159 = vector.broadcast %cst_22 : f32 to vector<64x32xf32>
    %160 = arith.maximumf %158, %159 : vector<64x32xf32>
    %c0_23 = arith.constant 0 : index
    %c0_24 = arith.constant 0 : index
    %161 = vector.load %arg5[%c0_23, %c0_24] : memref<32x128xf32, #tpu.memory_space<vmem>>, vector<32x128xf32>
    %cst_25 = arith.constant dense<0.000000e+00> : vector<64x128xf32>
    %162 = tpu.matmul %160, %161, %cst_25 {dimension_numbers = #tpu.dot_dimension_numbers<[1], [0], [0], [1], [0, 0, 1, 1], [], []>} : vector<64x32xf32>, vector<32x128xf32>, vector<64x128xf32> -> vector<64x128xf32>
    %c0_26 = arith.constant 0 : index
    %c0_27 = arith.constant 0 : index
    %163 = vector.load %arg6[%c0_26, %c0_27] : memref<1x128xf32, #tpu.memory_space<vmem>>, vector<1x128xf32>
    %164 = vector.broadcast %163 : vector<1x128xf32> to vector<64x128xf32>
    %165 = arith.addf %162, %164 : vector<64x128xf32>
    %c0_28 = arith.constant 0 : index
    %c0_29 = arith.constant 0 : index
    %c0_30 = arith.constant 0 : index
    %166 = vector.load %arg7[%c0_28, %c0_29, %c0_30] : memref<1x64x128xf32, #tpu.memory_space<vmem>>, vector<1x64x128xf32>
    %167 = vector.shape_cast %166 : vector<1x64x128xf32> to vector<64x128xf32>
    %168 = vector.shape_cast %165 : vector<64x128xf32> to vector<1x64x128xf32>
    tpu.vector_store %arg7[%c0_28, %c0_29, %c0_30], %168 {strides = array<i32>} : memref<1x64x128xf32, #tpu.memory_space<vmem>>, vector<1x64x128xf32>,
    return
  }
  func.func @transform_0(%arg0: i32) -> (i32, i32, i32) {
    %c0_i32 = arith.constant 0 : i32
    %c0_i32_0 = arith.constant 0 : i32
    %c0_i32_1 = arith.constant 0 : i32
    return %arg0, %c0_i32, %c0_i32_0 : i32, i32, i32
  }
  func.func @transform_1(%arg0: i32) -> (i32, i32) {
    %c0_i32 = arith.constant 0 : i32
    %c0_i32_0 = arith.constant 0 : i32
    %c0_i32_1 = arith.constant 0 : i32
    return %c0_i32, %c0_i32_0 : i32, i32
  }
  func.func @transform_2(%arg0: i32) -> (i32, i32) {
    %c0_i32 = arith.constant 0 : i32
    %c0_i32_0 = arith.constant 0 : i32
    %c0_i32_1 = arith.constant 0 : i32
    return %c0_i32, %c0_i32_0 : i32, i32
  }
  func.func @transform_3(%arg0: i32) -> (i32, i32) {
    %c0_i32 = arith.constant 0 : i32
    %c0_i32_0 = arith.constant 0 : i32
    %c0_i32_1 = arith.constant 0 : i32
    return %c0_i32, %c0_i32_0 : i32, i32
  }
  func.func @transform_4(%arg0: i32) -> (i32, i32) {
    %c0_i32 = arith.constant 0 : i32
    %c0_i32_0 = arith.constant 0 : i32
    %c0_i32_1 = arith.constant 0 : i32
    return %c0_i32, %c0_i32_0 : i32, i32
  }
  func.func @transform_5(%arg0: i32) -> (i32, i32) {
    %c0_i32 = arith.constant 0 : i32
    %c0_i32_0 = arith.constant 0 : i32
    %c0_i32_1 = arith.constant 0 : i32
    return %c0_i32, %c0_i32_0 : i32, i32
  }
  func.func @transform_6(%arg0: i32) -> (i32, i32, i32) {
    %c0_i32 = arith.constant 0 : i32
    %c0_i32_0 = arith.constant 0 : i32
    %c0_i32_1 = arith.constant 0 : i32
    return %arg0, %c0_i32, %c0_i32_0 : i32, i32, i32
  }
}

</mosaic_0001>

<llo_original>
// kernel: tpu_custom_call.1
$region0: #{tpu_custom_call.1}
  #allocation0 [shape = 'u32[]', space=smem, size = 0x4, offset = 0x4, fixed_abs, tag = 'smem constant byte address 0x4 - core index']
  #allocation1 [shape = 'u32[72,128]{1,0:T(1,128)}', space=vmem, size = 0x9000, scoped, tag = 'internal scratch']
  %s0 = inlined_call_operand.vmem [shape: f32[1,64,16], index: 0, kind: input, shape index: {}]
  %s1 = inlined_call_operand.vmem [shape: f32[16,128], index: 1, kind: input, shape index: {}]
  %s2 = inlined_call_operand.vmem [shape: f32[32,128], index: 2, kind: input, shape index: {}]
  %s3 = inlined_call_operand.vmem [shape: f32[1,128], index: 3, kind: input, shape index: {}]
  %s4 = inlined_call_operand.vmem [shape: f32[32,128], index: 4, kind: input, shape index: {}]
  %s5 = inlined_call_operand.vmem [shape: f32[1,128], index: 5, kind: input, shape index: {}]
  %s6 = inlined_call_operand.hbm [shape: f32[1,64,128], index: 6, kind: output, shape index: {}]
  %s7 = sld [smem:[#allocation0]]
  $region34: #{tpu_custom_call.1} parent=0
    _
  %s9 = ssub.s32 1, %s7
  %s10 = scalar_select 0, %s9, %s7
  $region1: #{tpu_custom_call.1} parent=0
    #allocation2 [shape = 'u8[32768]{0}', space=vmem, size = 0x8000, scoped, tag = 'output window, operand 0, single buffered']
    #allocation3 [shape = 's32[1]{0}', space=sflag, size = 0x4, scoped, tag = 'scoped memory for tpu_custom_call.1']
    %11 = vsyncpa [#allocation3], 0
    // Predicated region
    $region2: #{tpu_custom_call.1} parent=1 // pred_check
      _
    $region3: #{tpu_custom_call.1} parent=1 // pred_check_branch
      %13 = sbr.rel (0) target = $region5
    $region4: #{tpu_custom_call.1} parent=1 // pred_region
      _
    $region5: #{tpu_custom_call.1} parent=1 // pred_fallthru
      _
    // Predicated region
    $region6: #{tpu_custom_call.1} parent=1 // pred_check
      _
    $region7: #{tpu_custom_call.1} parent=1 // pred_check_branch
      %15 = sbr.rel (0) target = $region9
    $region8: #{tpu_custom_call.1} parent=1 // pred_region
      _
    $region9: #{tpu_custom_call.1} parent=1 // pred_fallthru
      _
    // Predicated region
    $region10: #{tpu_custom_call.1} parent=1 // pred_check
      _
    $region11: #{tpu_custom_call.1} parent=1 // pred_check_branch
      %17 = sbr.rel (0) target = $region13
    $region12: #{tpu_custom_call.1} parent=1 // pred_region
      _
    $region13: #{tpu_custom_call.1} parent=1 // pred_fallthru
      _
    // Predicated region
    $region14: #{tpu_custom_call.1} parent=1 // pred_check
      _
    $region15: #{tpu_custom_call.1} parent=1 // pred_check_branch
      %19 = sbr.rel (0) target = $region17
    $region16: #{tpu_custom_call.1} parent=1 // pred_region
      _
    $region17: #{tpu_custom_call.1} parent=1 // pred_fallthru
      _
    // Predicated region
    $region18: #{tpu_custom_call.1} parent=1 // pred_check
      _
    $region19: #{tpu_custom_call.1} parent=1 // pred_check_branch
      %21 = sbr.rel (0) target = $region21
    $region20: #{tpu_custom_call.1} parent=1 // pred_region
      _
    $region21: #{tpu_custom_call.1} parent=1 // pred_fallthru
      _
    // Predicated region
    $region22: #{tpu_custom_call.1} parent=1 // pred_check
      _
    $region23: #{tpu_custom_call.1} parent=1 // pred_check_branch
      %23 = sbr.rel (0) target = $region25
    $region24: #{tpu_custom_call.1} parent=1 // pred_region
      _
    $region25: #{tpu_custom_call.1} parent=1 // pred_fallthru
      _
    %v24 = vld [vmem:[%s0] sm:$0xff]
    %v25 = vld [vmem:[%s0 + $0x8] sm:$0xff]
    %v26 = vld [vmem:[%s0 + $0x10] sm:$0xff]
    %v27 = vld [vmem:[%s0 + $0x18] sm:$0xff]
    %v28 = vld [vmem:[%s0 + $0x20] sm:$0xff]
    %v29 = vld [vmem:[%s0 + $0x28] sm:$0xff]
    %v30 = vld [vmem:[%s0 + $0x30] sm:$0xff]
    %v31 = vld [vmem:[%s0 + $0x38] sm:$0xff]
    %v32 = vld [vmem:[%s1] sm:$0xff]
    %v33 = vld [vmem:[%s1 + $0x8] sm:$0xff]
    %v34 = vld [vmem:[%s3] sm:$0x1]
    %v36 = vperm.slane %v34, 0
    %vm38 = vcmask 130048
    %v40 = vsel %vm38, %v24, 0
    %v43 = vsel %vm38, %v25, 0
    %v46 = vsel %vm38, %v26, 0
    %v49 = vsel %vm38, %v27, 0
    %v52 = vsel %vm38, %v28, 0
    %v55 = vsel %vm38, %v29, 0
    %v58 = vsel %vm38, %v30, 0
    %v61 = vsel %vm38, %v31, 0
    %63 = vmatpush.msra.mxu0 0.0
    %64 = vmatpush.msra.mxu0 0.0
    %65 = vmatpush.msra.mxu0 0.0
    %66 = vmatpush.msra.mxu0 0.0
    %67 = vmatpush.msra.mxu0 0.0
    %68 = vmatpush.msra.mxu0 0.0
    %69 = vmatpush.msra.mxu0 0.0
    %70 = vmatpush.msra.mxu0 0.0
    %71 = vmatpush.msra.mxu0 0.0
    %72 = vmatpush.msra.mxu0 0.0
    %73 = vmatpush.msra.mxu0 0.0
    %74 = vmatpush.msra.mxu0 0.0
    %75 = vmatpush.msra.mxu0 0.0
    %76 = vmatpush.msra.mxu0 0.0
    %77 = vmatpush.msra.mxu0 %v33
    %78 = vmatpush.msra.mxu0 %v32
    %79 = vmatmul.f32.gmra.mxu0 %v40
    %v80 = vpop.f32.mrf.mxu0
    %v81 = vadd.f32 %v36, %v80
    %82 = vmatmul.f32.gmra.mxu0 %v43
    %v83 = vpop.f32.mrf.mxu0
    %v84 = vadd.f32 %v36, %v83
    %85 = vmatmul.f32.gmra.mxu0 %v46
    %v86 = vpop.f32.mrf.mxu0
    %v87 = vadd.f32 %v36, %v86
    %88 = vmatmul.f32.gmra.mxu0 %v49
    %v89 = vpop.f32.mrf.mxu0
    %v90 = vadd.f32 %v36, %v89
    %91 = vmatmul.f32.gmra.mxu0 %v52
    %v92 = vpop.f32.mrf.mxu0
    %v93 = vadd.f32 %v36, %v92
    %94 = vmatmul.f32.gmra.mxu0 %v55
    %v95 = vpop.f32.mrf.mxu0
    %v96 = vadd.f32 %v36, %v95
    %97 = vmatmul.f32.gmra.mxu0 %v58
    %v98 = vpop.f32.mrf.mxu0
    %v99 = vadd.f32 %v36, %v98
    %100 = vmatmul.f32.gmra.mxu0 %v61
    %v101 = vpop.f32.mrf.mxu0
    %v102 = vadd.f32 %v36, %v101
    %103 = vdwg.mxu0
    %v104 = vld [vmem:[%s2] sm:$0xff]
    %v105 = vld [vmem:[%s2 + $0x8] sm:$0xff]
    %v106 = vld [vmem:[%s2 + $0x10] sm:$0xff]
    %v107 = vld [vmem:[%s2 + $0x18] sm:$0xff]
    %v108 = vlaneseq
    %v109 = vand.u32 %v108, 127
    %vm110 = vcmp.ge.s32.totalorder %v109, 64
    %vm111 = vcmp.lt.s32.totalorder %v109, 96
    %vm112 = vmand %vm110, %vm111
    %v113 = vsel %vm112, 1.0, 0.5
    %v114 = vsel %vm112, 0.0, 0.5
    %vm115 = vcmask 261120
    %v117 = vsel %vm115, 0.0, 0
    %119 = vmatpush.msra.mxu0 0.0
    %120 = vmatpush.msra.mxu0 0.0
    %121 = vmatpush.msra.mxu0 0.0
    %122 = vmatpush.msra.mxu0 0.0
    %123 = vmatpush.msra.mxu0 0.0
    %124 = vmatpush.msra.mxu0 0.0
    %125 = vmatpush.msra.mxu0 0.0
    %126 = vmatpush.msra.mxu0 0.0
    %127 = vmatpush.msra.mxu0 0.0
    %128 = vmatpush.msra.mxu0 0.0
    %129 = vmatpush.msra.mxu0 0.0
    %130 = vmatpush.msra.mxu0 0.0
    %131 = vmatpush.msra.mxu0 %v107
    %132 = vmatpush.msra.mxu0 %v106
    %133 = vmatpush.msra.mxu0 %v105
    %134 = vmatpush.msra.mxu0 %v104
    %135 = vmatmul.f32.gmra.mxu0 %v117
    %v136 = vpop.f32.mrf.mxu0
    %v137 = vadd.f32 0.0, %v136
    %138 = vdwg.mxu0
    %v139 = vadd.f32 %v81, %v137
    %v140 = vtanh.pop %v139
    %v141 = vmul.f32 %v140, %v113
    %v142 = vadd.f32 %v141, %v114
    %v143 = vmul.f32 %v142, 0.0
    %145 = vrot.lane.b32.xlu0 %v142, 64
    %v146 = vpop.permute.xlu0 %145
    %v148 = vmul.f32 %v142, %v146
    %150 = vrot.lane.b32.xlu0 %v148, 32
    %v151 = vpop.permute.xlu0 %150
    %v153 = vadd.f32 %v143, %v151
    %v154 = vtanh.pop %v153
    %156 = vrot.lane.b32.xlu0 %v154, 64
    %v157 = vpop.permute.xlu0 %156
    %v159 = vmul.f32 %v142, %v157
    %161 = vrot.lane.b32.xlu0 %v159, 32
    %v162 = vpop.permute.xlu0 %161
    %v163 = vsel %vm115, %v162, 0
    %165 = vmatpush.msra.mxu0 0.0
    %166 = vmatpush.msra.mxu0 0.0
    %167 = vmatpush.msra.mxu0 0.0
    %168 = vmatpush.msra.mxu0 0.0
    %169 = vmatpush.msra.mxu0 0.0
    %170 = vmatpush.msra.mxu0 0.0
    %171 = vmatpush.msra.mxu0 0.0
    %172 = vmatpush.msra.mxu0 0.0
    %173 = vmatpush.msra.mxu0 0.0
    %174 = vmatpush.msra.mxu0 0.0
    %175 = vmatpush.msra.mxu0 0.0
    %176 = vmatpush.msra.mxu0 0.0
    %177 = vmatpush.msra.mxu0 %v107
    %178 = vmatpush.msra.mxu0 %v106
    %179 = vmatpush.msra.mxu0 %v105
    %180 = vmatpush.msra.mxu0 %v104
    %181 = vmatmul.f32.gmra.mxu0 %v163
    %v182 = vpop.f32.mrf.mxu0
    %v183 = vadd.f32 0.0, %v182
    %184 = vdwg.mxu0
    %v185 = vadd.f32 %v84, %v183
    %v186 = vtanh.pop %v185
    %v187 = vmul.f32 %v186, %v113
    %v188 = vadd.f32 %v187, %v114
    %v189 = vmul.f32 %v188, %v153
    %191 = vrot.lane.b32.xlu0 %v188, 64
    %v192 = vpop.permute.xlu0 %191
    %v194 = vmul.f32 %v188, %v192
    %196 = vrot.lane.b32.xlu0 %v194, 32
    %v197 = vpop.permute.xlu0 %196
    %v199 = vadd.f32 %v189, %v197
    %v200 = vtanh.pop %v199
    %202 = vrot.lane.b32.xlu0 %v200, 64
    %v203 = vpop.permute.xlu0 %202
    %v205 = vmul.f32 %v188, %v203
    %207 = vrot.lane.b32.xlu0 %v205, 32
    %v208 = vpop.permute.xlu0 %207
    %v209 = vsel %vm115, %v208, 0
    %211 = vmatpush.msra.mxu0 0.0
    %212 = vmatpush.msra.mxu0 0.0
    %213 = vmatpush.msra.mxu0 0.0
    %214 = vmatpush.msra.mxu0 0.0
    %215 = vmatpush.msra.mxu0 0.0
    %216 = vmatpush.msra.mxu0 0.0
    %217 = vmatpush.msra.mxu0 0.0
    %218 = vmatpush.msra.mxu0 0.0
    %219 = vmatpush.msra.mxu0 0.0
    %220 = vmatpush.msra.mxu0 0.0
    %221 = vmatpush.msra.mxu0 0.0
    %222 = vmatpush.msra.mxu0 0.0
    %223 = vmatpush.msra.mxu0 %v107
    %224 = vmatpush.msra.mxu0 %v106
    %225 = vmatpush.msra.mxu0 %v105
    %226 = vmatpush.msra.mxu0 %v104
    %227 = vmatmul.f32.gmra.mxu0 %v209
    %v228 = vpop.f32.mrf.mxu0
    %v229 = vadd.f32 0.0, %v228
    %230 = vdwg.mxu0
    %v231 = vadd.f32 %v87, %v229
    %v232 = vtanh.pop %v231
    %v233 = vmul.f32 %v232, %v113
    %v234 = vadd.f32 %v233, %v114
    %v235 = vmul.f32 %v234, %v199
    %237 = vrot.lane.b32.xlu0 %v234, 64
    %v238 = vpop.permute.xlu0 %237
    %v240 = vmul.f32 %v234, %v238
    %242 = vrot.lane.b32.xlu0 %v240, 32
    %v243 = vpop.permute.xlu0 %242
    %v245 = vadd.f32 %v235, %v243
    %v246 = vtanh.pop %v245
    %248 = vrot.lane.b32.xlu0 %v246, 64
    %v249 = vpop.permute.xlu0 %248
    %v251 = vmul.f32 %v234, %v249
    %253 = vrot.lane.b32.xlu0 %v251, 32
    %v254 = vpop.permute.xlu0 %253
    %v255 = vsel %vm115, %v254, 0
    %257 = vmatpush.msra.mxu0 0.0
    %258 = vmatpush.msra.mxu0 0.0
    %259 = vmatpush.msra.mxu0 0.0
    %260 = vmatpush.msra.mxu0 0.0
    %261 = vmatpush.msra.mxu0 0.0
    %262 = vmatpush.msra.mxu0 0.0
    %263 = vmatpush.msra.mxu0 0.0
    %264 = vmatpush.msra.mxu0 0.0
    %265 = vmatpush.msra.mxu0 0.0
    %266 = vmatpush.msra.mxu0 0.0
    %267 = vmatpush.msra.mxu0 0.0
    %268 = vmatpush.msra.mxu0 0.0
    %269 = vmatpush.msra.mxu0 %v107
    %270 = vmatpush.msra.mxu0 %v106
    %271 = vmatpush.msra.mxu0 %v105
    %272 = vmatpush.msra.mxu0 %v104
    %273 = vmatmul.f32.gmra.mxu0 %v255
    %v274 = vpop.f32.mrf.mxu0
    %v275 = vadd.f32 0.0, %v274
    %276 = vdwg.mxu0
    %v277 = vadd.f32 %v90, %v275
    %v278 = vtanh.pop %v277
    %v279 = vmul.f32 %v278, %v113
    %v280 = vadd.f32 %v279, %v114
    %v281 = vmul.f32 %v280, %v245
    %283 = vrot.lane.b32.xlu0 %v280, 64
    %v284 = vpop.permute.xlu0 %283
    %v286 = vmul.f32 %v280, %v284
    %288 = vrot.lane.b32.xlu0 %v286, 32
    %v289 = vpop.permute.xlu0 %288
    %v291 = vadd.f32 %v281, %v289
    %v292 = vtanh.pop %v291
    %294 = vrot.lane.b32.xlu0 %v292, 64
    %v295 = vpop.permute.xlu0 %294
    %v297 = vmul.f32 %v280, %v295
    %299 = vrot.lane.b32.xlu0 %v297, 32
    %v300 = vpop.permute.xlu0 %299
    %v301 = vsel %vm115, %v300, 0
    %303 = vmatpush.msra.mxu0 0.0
    %304 = vmatpush.msra.mxu0 0.0
    %305 = vmatpush.msra.mxu0 0.0
    %306 = vmatpush.msra.mxu0 0.0
    %307 = vmatpush.msra.mxu0 0.0
    %308 = vmatpush.msra.mxu0 0.0
    %309 = vmatpush.msra.mxu0 0.0
    %310 = vmatpush.msra.mxu0 0.0
    %311 = vmatpush.msra.mxu0 0.0
    %312 = vmatpush.msra.mxu0 0.0
    %313 = vmatpush.msra.mxu0 0.0
    %314 = vmatpush.msra.mxu0 0.0
    %315 = vmatpush.msra.mxu0 %v107
    %316 = vmatpush.msra.mxu0 %v106
    %317 = vmatpush.msra.mxu0 %v105
    %318 = vmatpush.msra.mxu0 %v104
    %319 = vmatmul.f32.gmra.mxu0 %v301
    %v320 = vpop.f32.mrf.mxu0
    %v321 = vadd.f32 0.0, %v320
    %322 = vdwg.mxu0
    %v323 = vadd.f32 %v93, %v321
    %v324 = vtanh.pop %v323
    %v325 = vmul.f32 %v324, %v113
    %v326 = vadd.f32 %v325, %v114
    %v327 = vmul.f32 %v326, %v291
    %329 = vrot.lane.b32.xlu0 %v326, 64
    %v330 = vpop.permute.xlu0 %329
    %v332 = vmul.f32 %v326, %v330
    %334 = vrot.lane.b32.xlu0 %v332, 32
    %v335 = vpop.permute.xlu0 %334
    %v337 = vadd.f32 %v327, %v335
    %v338 = vtanh.pop %v337
    %340 = vrot.lane.b32.xlu0 %v338, 64
    %v341 = vpop.permute.xlu0 %340
    %v343 = vmul.f32 %v326, %v341
    %345 = vrot.lane.b32.xlu0 %v343, 32
    %v346 = vpop.permute.xlu0 %345
    %v347 = vsel %vm115, %v346, 0
    %349 = vmatpush.msra.mxu0 0.0
    %350 = vmatpush.msra.mxu0 0.0
    %351 = vmatpush.msra.mxu0 0.0
    %352 = vmatpush.msra.mxu0 0.0
    %353 = vmatpush.msra.mxu0 0.0
    %354 = vmatpush.msra.mxu0 0.0
    %355 = vmatpush.msra.mxu0 0.0
    %356 = vmatpush.msra.mxu0 0.0
    %357 = vmatpush.msra.mxu0 0.0
    %358 = vmatpush.msra.mxu0 0.0
    %359 = vmatpush.msra.mxu0 0.0
    %360 = vmatpush.msra.mxu0 0.0
    %361 = vmatpush.msra.mxu0 %v107
    %362 = vmatpush.msra.mxu0 %v106
    %363 = vmatpush.msra.mxu0 %v105
    %364 = vmatpush.msra.mxu0 %v104
    %365 = vmatmul.f32.gmra.mxu0 %v347
    %v366 = vpop.f32.mrf.mxu0
    %v367 = vadd.f32 0.0, %v366
    %368 = vdwg.mxu0
    %v369 = vadd.f32 %v96, %v367
    %v370 = vtanh.pop %v369
    %v371 = vmul.f32 %v370, %v113
    %v372 = vadd.f32 %v371, %v114
    %v373 = vmul.f32 %v372, %v337
    %375 = vrot.lane.b32.xlu0 %v372, 64
    %v376 = vpop.permute.xlu0 %375
    %v378 = vmul.f32 %v372, %v376
    %380 = vrot.lane.b32.xlu0 %v378, 32
    %v381 = vpop.permute.xlu0 %380
    %v383 = vadd.f32 %v373, %v381
    %v384 = vtanh.pop %v383
    %386 = vrot.lane.b32.xlu0 %v384, 64
    %v387 = vpop.permute.xlu0 %386
    %v389 = vmul.f32 %v372, %v387
    %391 = vrot.lane.b32.xlu0 %v389, 32
    %v392 = vpop.permute.xlu0 %391
    %v393 = vsel %vm115, %v392, 0
    %395 = vmatpush.msra.mxu0 0.0
    %396 = vmatpush.msra.mxu0 0.0
    %397 = vmatpush.msra.mxu0 0.0
    %398 = vmatpush.msra.mxu0 0.0
    %399 = vmatpush.msra.mxu0 0.0
    %400 = vmatpush.msra.mxu0 0.0
    %401 = vmatpush.msra.mxu0 0.0
    %402 = vmatpush.msra.mxu0 0.0
    %403 = vmatpush.msra.mxu0 0.0
    %404 = vmatpush.msra.mxu0 0.0
    %405 = vmatpush.msra.mxu0 0.0
    %406 = vmatpush.msra.mxu0 0.0
    %407 = vmatpush.msra.mxu0 %v107
    %408 = vmatpush.msra.mxu0 %v106
    %409 = vmatpush.msra.mxu0 %v105
    %410 = vmatpush.msra.mxu0 %v104
    %411 = vmatmul.f32.gmra.mxu0 %v393
    %v412 = vpop.f32.mrf.mxu0
    %v413 = vadd.f32 0.0, %v412
    %414 = vdwg.mxu0
    %v415 = vadd.f32 %v99, %v413
    %v416 = vtanh.pop %v415
    %v417 = vmul.f32 %v416, %v113
    %v418 = vadd.f32 %v417, %v114
    %v419 = vmul.f32 %v418, %v383
    %421 = vrot.lane.b32.xlu0 %v418, 64
    %v422 = vpop.permute.xlu0 %421
    %v424 = vmul.f32 %v418, %v422
    %426 = vrot.lane.b32.xlu0 %v424, 32
    %v427 = vpop.permute.xlu0 %426
    %v429 = vadd.f32 %v419, %v427
    %v430 = vtanh.pop %v429
    %432 = vrot.lane.b32.xlu0 %v430, 64
    %v433 = vpop.permute.xlu0 %432
    %v435 = vmul.f32 %v418, %v433
    %437 = vrot.lane.b32.xlu0 %v435, 32
    %v438 = vpop.permute.xlu0 %437
    %v439 = vsel %vm115, %v438, 0
    %441 = vmatpush.msra.mxu0 0.0
    %442 = vmatpush.msra.mxu0 0.0
    %443 = vmatpush.msra.mxu0 0.0
    %444 = vmatpush.msra.mxu0 0.0
    %445 = vmatpush.msra.mxu0 0.0
    %446 = vmatpush.msra.mxu0 0.0
    %447 = vmatpush.msra.mxu0 0.0
    %448 = vmatpush.msra.mxu0 0.0
    %449 = vmatpush.msra.mxu0 0.0
    %450 = vmatpush.msra.mxu0 0.0
    %451 = vmatpush.msra.mxu0 0.0
    %452 = vmatpush.msra.mxu0 0.0
    %453 = vmatpush.msra.mxu0 %v107
    %454 = vmatpush.msra.mxu0 %v106
    %455 = vmatpush.msra.mxu0 %v105
    %456 = vmatpush.msra.mxu0 %v104
    %457 = vmatmul.f32.gmra.mxu0 %v439
    %v458 = vpop.f32.mrf.mxu0
    %v459 = vadd.f32 0.0, %v458
    %460 = vdwg.mxu0
    %v461 = vadd.f32 %v102, %v459
    %v462 = vtanh.pop %v461
    %v463 = vmul.f32 %v462, %v113
    %v464 = vadd.f32 %v463, %v114
    %v465 = vmul.f32 %v464, %v429
    %467 = vrot.lane.b32.xlu0 %v464, 64
    %v468 = vpop.permute.xlu0 %467
    %v470 = vmul.f32 %v464, %v468
    %472 = vrot.lane.b32.xlu0 %v470, 32
    %v473 = vpop.permute.xlu0 %472
    %v475 = vadd.f32 %v465, %v473
    %v476 = vtanh.pop %v475
    %478 = vrot.lane.b32.xlu0 %v476, 64
    %v479 = vpop.permute.xlu0 %478
    %v481 = vmul.f32 %v464, %v479
    %v482 = vmax.f32 %v159, 0.0
    %v483 = vmax.f32 %v205, 0.0
    %v484 = vmax.f32 %v251, 0.0
    %v485 = vmax.f32 %v297, 0.0
    %v486 = vmax.f32 %v343, 0.0
    %v487 = vmax.f32 %v389, 0.0
    %v488 = vmax.f32 %v435, 0.0
    %v489 = vmax.f32 %v481, 0.0
    %v490 = vld [vmem:[%s4] sm:$0xff]
    %v491 = vld [vmem:[%s4 + $0x8] sm:$0xff]
    %v492 = vld [vmem:[%s4 + $0x10] sm:$0xff]
    %v493 = vld [vmem:[%s4 + $0x18] sm:$0xff]
    %v494 = vld [vmem:[%s5] sm:$0x1]
    %v496 = vperm.slane %v494, 0
    %506 = vrot.lane.b32.xlu0 %v482, 32
    %v507 = vpop.permute.xlu0 %506
    %508 = vrot.lane.b32.xlu0 %v483, 32
    %v509 = vpop.permute.xlu0 %508
    %510 = vrot.lane.b32.xlu0 %v484, 32
    %v511 = vpop.permute.xlu0 %510
    %512 = vrot.lane.b32.xlu0 %v485, 32
    %v513 = vpop.permute.xlu0 %512
    %514 = vrot.lane.b32.xlu0 %v486, 32
    %v515 = vpop.permute.xlu0 %514
    %516 = vrot.lane.b32.xlu0 %v487, 32
    %v517 = vpop.permute.xlu0 %516
    %518 = vrot.lane.b32.xlu0 %v488, 32
    %v519 = vpop.permute.xlu0 %518
    %520 = vrot.lane.b32.xlu0 %v489, 32
    %v521 = vpop.permute.xlu0 %520
    %v522 = vsel %vm115, %v507, 0
    %v524 = vsel %vm115, %v509, 0
    %v526 = vsel %vm115, %v511, 0
    %v528 = vsel %vm115, %v513, 0
    %v530 = vsel %vm115, %v515, 0
    %v532 = vsel %vm115, %v517, 0
    %v534 = vsel %vm115, %v519, 0
    %v536 = vsel %vm115, %v521, 0
    %538 = vmatpush.msra.mxu0 0.0
    %539 = vmatpush.msra.mxu0 0.0
    %540 = vmatpush.msra.mxu0 0.0
    %541 = vmatpush.msra.mxu0 0.0
    %542 = vmatpush.msra.mxu0 0.0
    %543 = vmatpush.msra.mxu0 0.0
    %544 = vmatpush.msra.mxu0 0.0
    %545 = vmatpush.msra.mxu0 0.0
    %546 = vmatpush.msra.mxu0 0.0
    %547 = vmatpush.msra.mxu0 0.0
    %548 = vmatpush.msra.mxu0 0.0
    %549 = vmatpush.msra.mxu0 0.0
    %550 = vmatpush.msra.mxu0 %v493
    %551 = vmatpush.msra.mxu0 %v492
    %552 = vmatpush.msra.mxu0 %v491
    %553 = vmatpush.msra.mxu0 %v490
    %554 = vmatmul.f32.gmra.mxu0 %v522
    %v555 = vpop.f32.mrf.mxu0
    %v556 = vadd.f32 %v496, %v555
    %557 = vmatmul.f32.gmra.mxu0 %v524
    %v558 = vpop.f32.mrf.mxu0
    %v559 = vadd.f32 %v496, %v558
    %560 = vmatmul.f32.gmra.mxu0 %v526
    %v561 = vpop.f32.mrf.mxu0
    %v562 = vadd.f32 %v496, %v561
    %563 = vmatmul.f32.gmra.mxu0 %v528
    %v564 = vpop.f32.mrf.mxu0
    %v565 = vadd.f32 %v496, %v564
    %566 = vmatmul.f32.gmra.mxu0 %v530
    %v567 = vpop.f32.mrf.mxu0
    %v568 = vadd.f32 %v496, %v567
    %569 = vmatmul.f32.gmra.mxu0 %v532
    %v570 = vpop.f32.mrf.mxu0
    %v571 = vadd.f32 %v496, %v570
    %572 = vmatmul.f32.gmra.mxu0 %v534
    %v573 = vpop.f32.mrf.mxu0
    %v574 = vadd.f32 %v496, %v573
    %575 = vmatmul.f32.gmra.mxu0 %v536
    %v576 = vpop.f32.mrf.mxu0
    %v577 = vadd.f32 %v496, %v576
    %578 = vdwg.mxu0
    %579 = vst [vmem:[#allocation2] sm:$0xff] %v556
    %580 = vst [vmem:[#allocation2 + $0x8] sm:$0xff] %v559
    %581 = vst [vmem:[#allocation2 + $0x10] sm:$0xff] %v562
    %582 = vst [vmem:[#allocation2 + $0x18] sm:$0xff] %v565
    %583 = vst [vmem:[#allocation2 + $0x20] sm:$0xff] %v568
    %584 = vst [vmem:[#allocation2 + $0x28] sm:$0xff] %v571
    %585 = vst [vmem:[#allocation2 + $0x30] sm:$0xff] %v574
    %586 = vst [vmem:[#allocation2 + $0x38] sm:$0xff] %v577
    // Predicated region
    $region26: #{tpu_custom_call.1} parent=1 // pred_check
      _
    $region27: #{tpu_custom_call.1} parent=1 // pred_check_branch
      %588 = sbr.rel (0) target = $region29
    $region28: #{tpu_custom_call.1} parent=1 // pred_region
      %590 = vsyncadd [#allocation3], 0
      %s591 = sshll.u32 [#allocation2], 4
      %s592 = int_to_ptr.vmem [resolvable:$true] %s591
      %s593 = sshll.u32 %s6, 4
      %s594 = int_to_ptr.hbm [resolvable:$true] %s593
      %599 = dma.vmem_to_hbm [thread:$0]  %s592, 1024, %s594, [#allocation3], 128, 128, 8
    $region29: #{tpu_custom_call.1} parent=1 // pred_fallthru
      _
    // Predicated region
    $region30: #{tpu_custom_call.1} parent=1 // pred_check
      _
    $region31: #{tpu_custom_call.1} parent=1 // pred_check_branch
      %601 = sbr.rel (0) target = $region33
    $region32: #{tpu_custom_call.1} parent=1 // pred_region
      %603 = dma.done [#allocation3], 1024
    $region33: #{tpu_custom_call.1} parent=1 // pred_fallthru
      _
    %604 = vsyncpa [#allocation3], 1

</llo_original>
